<compile_context>
chip_gen: v5e
topology: v5e:2x2
jax: 0.10.0
libtpu: 0.0.40
codegen_flags: <defaults>
</compile_context>

<pallas_src>
import functools

import jax
import jax.numpy as jnp
from jax.experimental import pallas as pl
from jax.experimental.pallas import tpu as pltpu


def _shot_classifier_kernel(alpha_ref, beta_ref, lbias_ref,   # SMEM scalars
                            x_ref, w_ref,                     # VMEM tiles
                            out_ref,                          # VMEM output
                            acc_ref,                          # VMEM scratch
                            *, eps: float, seq_len: int):
    """One (batch-tile, seq-tile) grid step.

    Computes, across all seq tiles of a batch tile:
        logit = alpha/S * sum_{s,d} (x - mean_s)_{sd} * inv_std_s * w_d
                + beta * sum_d w_d + linear_bias
        prob  = sigmoid(logit)
    """
    k = pl.program_id(1)

    @pl.when(k == 0)
    def _init():
        acc_ref[...] = jnp.zeros_like(acc_ref)

    x = x_ref[...]                                            # (TB, TS, D) f32
    d = x.shape[-1]

    # --- LayerNormalization core (unbiased variance, eps added to std) ---
    mean = jnp.mean(x, axis=-1, keepdims=True)                # (TB, TS, 1)
    diff = x - mean
    var = jnp.sum(diff * diff, axis=-1, keepdims=True) * (1.0 / (d - 1))
    std = jnp.sqrt(var)
    inv = pl.reciprocal(std + jnp.float32(eps), approx=True)  # EUP slot

    # --- fold Linear(D,1) weight into the lane reduce (no pooled (B,D) tile) ---
    w = w_ref[...].reshape(1, 1, d)                           # (1, 1, D)
    tw = diff * inv * w                                       # (TB, TS, D)
    per_tok = jnp.sum(tw, axis=-1)                            # (TB, TS)  XLU
    acc_ref[...] += jnp.sum(per_tok, axis=-1, keepdims=True)  # (TB, 1)

    @pl.when(k == pl.num_programs(1) - 1)
    def _finalize():
        w_sum = jnp.sum(w_ref[...])                           # scalar, once
        logit = (alpha_ref[0] * (1.0 / seq_len)) * acc_ref[...] \
                + beta_ref[0] * w_sum + lbias_ref[0]
        out_ref[...] = jax.nn.sigmoid(logit)


def _largest_divisor_tile(total: int, target: int, multiple: int) -> int:
    """Largest t <= target that divides `total` and is a multiple of `multiple`;
    falls back to `total` (full extent is always a legal block size)."""
    t = min(target, total)
    t -= t % multiple
    while t >= multiple:
        if total % t == 0:
            return t
        t -= multiple
    return total


def shot_classifier_forward(x: jax.Array,
                            ln_alpha: jax.Array,
                            ln_bias: jax.Array,
                            linear_weight: jax.Array,
                            linear_bias: jax.Array,
                            *,
                            eps: float = 1e-6,
                            tile_b: int | None = None,
                            tile_s: int | None = None) -> jax.Array:
    """x: (B, S, D). Returns (B, 1) f32 probabilities."""
    bsz, seq, d_model = x.shape
    # d_model == 1 would divide by ddof (d-1) == 0 -> NaN, same as torch.
    assert d_model > 1, "d_model must be > 1 (unbiased std needs >= 2 elements)"
    assert linear_weight.shape == (1, d_model)
    assert ln_alpha.shape == (1,) and ln_bias.shape == (1,)
    assert linear_bias.shape == (1,)

    x = x.astype(jnp.float32)
    linear_weight = linear_weight.astype(jnp.float32)
    ln_alpha = ln_alpha.astype(jnp.float32)
    ln_bias = ln_bias.astype(jnp.float32)
    linear_bias = linear_bias.astype(jnp.float32)

    # Batch tile: the (TB, 1) output block needs TB % 8 == 0 or TB == B.
    if tile_b is None:
        tile_b = _largest_divisor_tile(bsz, 8, 8)
    # Seq tile: largest divisor of S (multiple of 8) that keeps one x buffer
    # around <= 4 MiB, so 2x double-buffering stays far below every gen's VMEM.
    if tile_s is None:
        max_ts = max(8, (4 * 1024 * 1024) // (tile_b * d_model * 4))
        max_ts -= max_ts % 8
        tile_s = _largest_divisor_tile(seq, max_ts, 8)

    assert bsz % tile_b == 0 and (tile_b % 8 == 0 or tile_b == bsz)
    assert seq % tile_s == 0 and (tile_s % 8 == 0 or tile_s == seq)

    grid = (bsz // tile_b, seq // tile_s)   # reduction (seq) axis last
    kernel = functools.partial(_shot_classifier_kernel, eps=eps, seq_len=seq)

    return pl.pallas_call(
        kernel,
        out_shape=jax.ShapeDtypeStruct((bsz, 1), jnp.float32),
        grid_spec=pltpu.PrefetchScalarGridSpec(
            # ln_alpha, ln_bias, linear_bias land in SMEM before the grid runs.
            num_scalar_prefetch=3,
            grid=grid,
            in_specs=[
                pl.BlockSpec((tile_b, tile_s, d_model),
                             lambda b, k, *_: (b, k, 0)),          # x
                pl.BlockSpec((1, d_model), lambda b, k, *_: (0, 0)),  # W (1, D)
            ],
            out_specs=pl.BlockSpec((tile_b, 1), lambda b, k, *_: (b, 0)),
            scratch_shapes=[pltpu.VMEM((tile_b, 1), jnp.float32)],
        ),
        compiler_params=pltpu.CompilerParams(
            dimension_semantics=("parallel", "arbitrary"),
            vmem_limit_bytes=32 * 1024 * 1024,
        ),
    )(ln_alpha, ln_bias, linear_bias, x, linear_weight)


def _reference(x, ln_alpha, ln_bias, linear_weight, linear_bias, eps=1e-6):
    """Pure-JAX reference mirroring the PyTorch forward."""
    mean = jnp.mean(x, axis=-1, keepdims=True)
    std = jnp.std(x, axis=-1, keepdims=True, ddof=1)   # torch .std is unbiased
    h = ln_alpha[0] * (x - mean) / (std + eps) + ln_bias[0]
    pooled = jnp.mean(h, axis=1)                       # (B, D)
    logit = pooled @ linear_weight.T + linear_bias     # (B, 1)
    return jax.nn.sigmoid(logit)


if __name__ == "__main__":
    # Small deterministic shapes consistent with the module's forward.
    # seq=16 with tile_s=8 exercises the accumulate-over-seq-tiles grid path.
    batch, seq, d_model = 2, 16, 32
    eps = 1e-6

    key = jax.random.PRNGKey(0)
    k_x, k_a, k_b, k_w, k_lb = jax.random.split(key, 5)

    x = jax.random.normal(k_x, (batch, seq, d_model), dtype=jnp.float32)
    ln_alpha = jax.random.normal(k_a, (1,), dtype=jnp.float32)
    ln_bias = jax.random.normal(k_b, (1,), dtype=jnp.float32)
    linear_weight = jax.random.normal(k_w, (1, d_model), dtype=jnp.float32) * 0.1
    linear_bias = jax.random.normal(k_lb, (1,), dtype=jnp.float32) * 0.1

    out = shot_classifier_forward(x, ln_alpha, ln_bias, linear_weight,
                                  linear_bias, eps=eps, tile_s=8)
    out = jax.block_until_ready(out)

    ref = _reference(x, ln_alpha, ln_bias, linear_weight, linear_bias, eps=eps)
    assert out.shape == (batch, 1)
    # Tolerance is relaxed slightly because pl.reciprocal(approx=True) differs
    # from an exact divide in the last few bits; any formula error would be
    # orders of magnitude larger than this.
    assert jnp.allclose(out, ref, atol=1e-3, rtol=1e-3), "mismatch vs reference"

    print("KERNEL_OK")
</pallas_src>

<mosaic_0001>
module attributes {stable_mosaic.version = 11 : i64} {
  func.func @_shot_classifier_kernel(%arg0: i32, %arg1: i32, %arg2: memref<1xf32, #tpu.memory_space<smem>>, %arg3: memref<1xf32, #tpu.memory_space<smem>>, %arg4: memref<1xf32, #tpu.memory_space<smem>>, %arg5: memref<2x8x32xf32, #tpu.memory_space<vmem>>, %arg6: memref<1x32xf32, #tpu.memory_space<vmem>>, %arg7: memref<2x1xf32, #tpu.memory_space<vmem>>, %arg8: memref<2x1xf32, #tpu.memory_space<vmem>>) attributes {dimension_semantics = [#tpu.dimension_semantics<parallel>, #tpu.dimension_semantics<arbitrary>], iteration_bounds = array<i64: 1, 2>, scalar_prefetch = 3 : i64, scratch_operands = 1 : i64, tpu.core_type = #tpu.core_type<tc>, window_params = [{transform_indices = @transform_0, window_bounds = array<i64: 2, 8, 32>}, {pipeline_mode = #tpu.pipeline_mode<synchronous>, transform_indices = @transform_1, window_bounds = array<i64: 1, 32>}, {transform_indices = @transform_2, window_bounds = array<i64: 2, 1>}]} {
    %c0_i32 = arith.constant 0 : i32
    %0 = arith.cmpi eq, %arg1, %c0_i32 : i32
    %1 = arith.extui %0 : i1 to i32
    %c0_i32_0 = arith.constant 0 : i32
    %2 = arith.cmpi ne, %1, %c0_i32_0 : i32
    scf.if %2 {
      %cst_16 = arith.constant 0.000000e+00 : f32
      %34 = vector.broadcast %cst_16 : f32 to vector<2x1xf32>
      %c0_17 = arith.constant 0 : index
      %c0_18 = arith.constant 0 : index
      %35 = vector.load %arg8[%c0_17, %c0_18] : memref<2x1xf32, #tpu.memory_space<vmem>>, vector<2x1xf32>
      tpu.vector_store %arg8[%c0_17, %c0_18], %34 {strides = array<i32>} : memref<2x1xf32, #tpu.memory_space<vmem>>, vector<2x1xf32>,
    } else {
    }
    %c0 = arith.constant 0 : index
    %c0_1 = arith.constant 0 : index
    %c0_2 = arith.constant 0 : index
    %3 = vector.load %arg5[%c0, %c0_1, %c0_2] : memref<2x8x32xf32, #tpu.memory_space<vmem>>, vector<2x8x32xf32>
    %cst = arith.constant dense<0.000000e+00> : vector<2x8xf32>
    %4 = vector.multi_reduction <add>, %3, %cst [2] : vector<2x8x32xf32> to vector<2x8xf32>
    %5 = vector.shape_cast %4 : vector<2x8xf32> to vector<2x8x1xf32>
    %cst_3 = arith.constant 3.200000e+01 : f32
    %6 = vector.broadcast %cst_3 : f32 to vector<2x8x1xf32>
    %7 = arith.divf %5, %6 : vector<2x8x1xf32>
    %8 = vector.broadcast %7 : vector<2x8x1xf32> to vector<2x8x32xf32>
    %9 = arith.subf %3, %8 : vector<2x8x32xf32>
    %10 = arith.mulf %9, %9 : vector<2x8x32xf32>
    %cst_4 = arith.constant dense<0.000000e+00> : vector<2x8xf32>
    %11 = vector.multi_reduction <add>, %10, %cst_4 [2] : vector<2x8x32xf32> to vector<2x8xf32>
    %12 = vector.shape_cast %11 : vector<2x8xf32> to vector<2x8x1xf32>
    %cst_5 = arith.constant 0.0322580636 : f32
    %13 = vector.broadcast %cst_5 : f32 to vector<2x8x1xf32>
    %14 = arith.mulf %12, %13 : vector<2x8x1xf32>
    %15 = math.sqrt %14 : vector<2x8x1xf32>
    %cst_6 = arith.constant 9.99999997E-7 : f32
    %16 = vector.broadcast %cst_6 : f32 to vector<2x8x1xf32>
    %17 = arith.addf %15, %16 : vector<2x8x1xf32>
    %18 = tpu.reciprocal %17 {approx = true} : vector<2x8x1xf32> -> vector<2x8x1xf32>
    %c0_7 = arith.constant 0 : index
    %c0_8 = arith.constant 0 : index
    %19 = vector.load %arg6[%c0_7, %c0_8] : memref<1x32xf32, #tpu.memory_space<vmem>>, vector<1x32xf32>
    %20 = vector.shape_cast %19 : vector<1x32xf32> to vector<1x1x32xf32>
    %21 = vector.broadcast %18 : vector<2x8x1xf32> to vector<2x8x32xf32>
    %22 = arith.mulf %9, %21 : vector<2x8x32xf32>
    %23 = vector.broadcast %20 : vector<1x1x32xf32> to vector<2x8x32xf32>
    %24 = arith.mulf %22, %23 : vector<2x8x32xf32>
    %cst_9 = arith.constant dense<0.000000e+00> : vector<2x8xf32>
    %25 = vector.multi_reduction <add>, %24, %cst_9 [2] : vector<2x8x32xf32> to vector<2x8xf32>
    %c0_10 = arith.constant 0 : index
    %c0_11 = arith.constant 0 : index
    %26 = vector.load %arg8[%c0_10, %c0_11] : memref<2x1xf32, #tpu.memory_space<vmem>>, vector<2x1xf32>
    %cst_12 = arith.constant dense<0.000000e+00> : vector<2xf32>
    %27 = vector.multi_reduction <add>, %25, %cst_12 [1] : vector<2x8xf32> to vector<2xf32>
    %28 = vector.shape_cast %27 : vector<2xf32> to vector<2x1xf32>
    %29 = arith.addf %26, %28 : vector<2x1xf32>
    %c0_13 = arith.constant 0 : index
    %c0_14 = arith.constant 0 : index
    %30 = vector.load %arg8[%c0_13, %c0_14] : memref<2x1xf32, #tpu.memory_space<vmem>>, vector<2x1xf32>
    tpu.vector_store %arg8[%c0_13, %c0_14], %29 {strides = array<i32>} : memref<2x1xf32, #tpu.memory_space<vmem>>, vector<2x1xf32>,
    %c1_i32 = arith.constant 1 : i32
    %31 = arith.cmpi eq, %arg1, %c1_i32 : i32
    %32 = arith.extui %31 : i1 to i32
    %c0_i32_15 = arith.constant 0 : i32
    %33 = arith.cmpi ne, %32, %c0_i32_15 : i32
    scf.if %33 {
      %c0_16 = arith.constant 0 : index
      %c0_17 = arith.constant 0 : index
      %34 = vector.load %arg6[%c0_16, %c0_17] : memref<1x32xf32, #tpu.memory_space<vmem>>, vector<1x32xf32>
      %35 = vector.shape_cast %34 : vector<1x32xf32> to vector<1x1x32xf32>
      %cst_18 = arith.constant dense<0.000000e+00> : vector<1xf32>
      %36 = vector.multi_reduction <add>, %35, %cst_18 [1, 2] : vector<1x1x32xf32> to vector<1xf32>
      %37 = vector.shape_cast %36 : vector<1xf32> to vector<1x1x1xf32>
      %38 = vector.extract %37[0, 0, 0] : f32 from vector<1x1x1xf32>
      %c0_19 = arith.constant 0 : index
      %39 = memref.load %arg2[%c0_19] : memref<1xf32, #tpu.memory_space<smem>>
      %cst_20 = arith.constant 6.250000e-02 : f32
      %40 = arith.mulf %39, %cst_20 : f32
      %c0_21 = arith.constant 0 : index
      %c0_22 = arith.constant 0 : index
      %41 = vector.load %arg8[%c0_21, %c0_22] : memref<2x1xf32, #tpu.memory_space<vmem>>, vector<2x1xf32>
      %42 = vector.broadcast %40 : f32 to vector<2x1xf32>
      %43 = arith.mulf %42, %41 : vector<2x1xf32>
      %c0_23 = arith.constant 0 : index
      %44 = memref.load %arg3[%c0_23] : memref<1xf32, #tpu.memory_space<smem>>
      %45 = arith.mulf %44, %38 : f32
      %46 = vector.broadcast %45 : f32 to vector<2x1xf32>
      %47 = arith.addf %43, %46 : vector<2x1xf32>
      %c0_24 = arith.constant 0 : index
      %48 = memref.load %arg4[%c0_24] : memref<1xf32, #tpu.memory_space<smem>>
      %49 = vector.broadcast %48 : f32 to vector<2x1xf32>
      %50 = arith.addf %47, %49 : vector<2x1xf32>
      %51 = arith.negf %50 : vector<2x1xf32>
      %52 = math.exp %51 : vector<2x1xf32>
      %cst_25 = arith.constant 1.000000e+00 : f32
      %53 = vector.broadcast %cst_25 : f32 to vector<2x1xf32>
      %54 = arith.addf %53, %52 : vector<2x1xf32>
      %55 = arith.divf %53, %54 : vector<2x1xf32>
      %c0_26 = arith.constant 0 : index
      %c0_27 = arith.constant 0 : index
      %56 = vector.load %arg7[%c0_26, %c0_27] : memref<2x1xf32, #tpu.memory_space<vmem>>, vector<2x1xf32>
      tpu.vector_store %arg7[%c0_26, %c0_27], %55 {strides = array<i32>} : memref<2x1xf32, #tpu.memory_space<vmem>>, vector<2x1xf32>,
    } else {
    }
    return
  }
  func.func @transform_0(%arg0: i32, %arg1: i32, %arg2: memref<1xf32, #tpu.memory_space<smem>>, %arg3: memref<1xf32, #tpu.memory_space<smem>>, %arg4: memref<1xf32, #tpu.memory_space<smem>>) -> (i32, i32, i32) {
    %c0_i32 = arith.constant 0 : i32
    %c0_i32_0 = arith.constant 0 : i32
    return %arg0, %arg1, %c0_i32 : i32, i32, i32
  }
  func.func @transform_1(%arg0: i32, %arg1: i32, %arg2: memref<1xf32, #tpu.memory_space<smem>>, %arg3: memref<1xf32, #tpu.memory_space<smem>>, %arg4: memref<1xf32, #tpu.memory_space<smem>>) -> (i32, i32) {
    %c0_i32 = arith.constant 0 : i32
    %c0_i32_0 = arith.constant 0 : i32
    %c0_i32_1 = arith.constant 0 : i32
    return %c0_i32, %c0_i32_0 : i32, i32
  }
  func.func @transform_2(%arg0: i32, %arg1: i32, %arg2: memref<1xf32, #tpu.memory_space<smem>>, %arg3: memref<1xf32, #tpu.memory_space<smem>>, %arg4: memref<1xf32, #tpu.memory_space<smem>>) -> (i32, i32) {
    %c0_i32 = arith.constant 0 : i32
    %c0_i32_0 = arith.constant 0 : i32
    return %arg0, %c0_i32 : i32, i32
  }
}

</mosaic_0001>

<llo_original>
// kernel: tpu_custom_call.1
$region0: #{tpu_custom_call.1}
  #allocation0 [shape = 'u32[]', space=smem, size = 0x4, offset = 0x4, fixed_abs, tag = 'smem constant byte address 0x4 - core index']
  #allocation1 [shape = 'u32[72,128]{1,0:T(1,128)}', space=vmem, size = 0x9000, scoped, tag = 'internal scratch']
  #allocation2 [shape = 'f32[2,1]{1,0:T(2,128)}', space=vmem, size = 0x400, scoped, tag = 'scratch operand']
  #allocation3 [shape = 's32[1]{0}', space=sflag, size = 0x4, scoped, tag = 'scoped memory for tpu_custom_call.1']
  #allocation4 [shape = 'f32[1]{0:T(128)S(6)}', space=smem, size = 0x200, scoped, tag = 'prefetched SMEM operand 0']
  #allocation5 [shape = 'f32[1]{0:T(128)S(6)}', space=smem, size = 0x200, scoped, tag = 'prefetched SMEM operand 1']
  #allocation6 [shape = 'f32[1]{0:T(128)S(6)}', space=smem, size = 0x200, scoped, tag = 'prefetched SMEM operand 2']
  %s0 = inlined_call_operand.<no memory space> [shape: f32[1], index: 0, kind: input, shape index: {}]
  %s1 = inlined_call_operand.<no memory space> [shape: f32[1], index: 1, kind: input, shape index: {}]
  %s2 = inlined_call_operand.<no memory space> [shape: f32[1], index: 2, kind: input, shape index: {}]
  %s3 = inlined_call_operand.hbm [shape: f32[2,16,32], index: 3, kind: input, shape index: {}]
  %s4 = inlined_call_operand.vmem [shape: f32[1,32], index: 4, kind: input, shape index: {}]
  %s5 = inlined_call_operand.vmem [shape: f32[2,1], index: 5, kind: output, shape index: {}]
  %s6 = sld [smem:[#allocation0]]
  $region53: #{tpu_custom_call.1} parent=0
    _
  %s8 = ssub.s32 1, %s6
  %s9 = scalar_select 0, %s8, %s6
  %10 = sst [smem:[#allocation4]] %s0
  %11 = sst [smem:[#allocation5]] %s1
  %12 = sst [smem:[#allocation6]] %s2
  $region1: #{tpu_custom_call.1} parent=0
    #allocation7 [shape = 'u8[16384]{0}', space=vmem, size = 0x4000, scoped, tag = 'input window, operand 3']
    #allocation8 [shape = 's32[2]{0}', space=sflag, size = 0x8, scoped, tag = 'scoped memory for tpu_custom_call.1']
    %13 = vsyncpa [#allocation8], 0
    %s14 = scalar_lea.sflag [#allocation8], 1
    %15 = vsyncpa %s14, 0
    loop: start=0, step=1, limit=4
    $region2: #{tpu_custom_call.1} parent=1 // loop_pre_header
      _
    $region3: #{tpu_custom_call.1} parent=1 // loop_header
      %s17 = sphi 0, %s21
      %p18 = scmp.ge.s32.totalorder %s17, 4
      %s24 = sphi 0, %s36
      %s25 = sphi 0, %s32
      %s26 = sphi 0, %s24
      %s27 = sphi 0, %s25
      %s28 = sphi 0, %s26
      %s29 = sphi 0, %s27
      %s41 = sphi 0, %s43
      %s44 = sphi 0, %s41
      %s45 = sphi 0, %s44
      %s61 = sphi 0, %s45
      %s65 = sphi 0, %s65
      %s67 = sphi 0, %s65
      %s68 = sphi 0, %s67
      %s82 = sphi 0, %s68
      %s88 = sphi 0, %s90
      %s91 = sphi 0, %s88
      %s92 = sphi 0, %s91
      %s108 = sphi 0, %s92
    $region4: #{tpu_custom_call.1} parent=1 // loop_header_branch
      %20 = sbr.rel (%p18) target = $region8
    $region5: #{tpu_custom_call.1} parent=1 // loop_body
      %s22 = ssub.s32 %s17, 1
      %s23 = ssub.s32 %s17, 2
      %s30 = sadd.s32 1, %s25
      %p31 = scmp.ge.s32.totalorder %s30, 2
      %s32 = scalar_select %p31, 0, %s30
      %s33 = sadd.s32 1, %s24
      %s34 = scalar_select %p31, %s33, %s24
      %p35 = scmp.ge.s32.totalorder %s34, 1
      %s36 = scalar_select %p35, 0, %s34
      %s37 = ssub.s32 %s24, %s36
      %s38 = ssub.s32 %s25, %s32
      %s39 = sor.u32 %s37, %s38
      %p40 = scmp.eq.s32.totalorder %s39, 0
      %s42 = sadd.s32 %s41, 1
      %s43 = scalar_select %p40, %s41, %s42
      %p46 = pneg %p40
      %p47 = scmp.eq.s32.totalorder %s17, 1
      %p48 = por %p46, %p47
      %p49 = scmp.ne.s32.totalorder %s41, %s44
      %p50 = scmp.eq.s32.totalorder %s17, 0
      %p51 = por %p49, %p50
      %p52 = scmp.ne.s32.totalorder %s41, %s44
      %p53 = scmp.eq.s32.totalorder %s22, 1
      %p54 = por %p52, %p53
      %p55 = scmp.ne.s32.totalorder %s44, %s45
      %p56 = scmp.eq.s32.totalorder %s22, 0
      %p57 = por %p55, %p56
      %p58 = scmp.ne.s32.totalorder %s44, %s45
      %p59 = scmp.eq.s32.totalorder %s23, 1
      %p60 = por %p58, %p59
      %p62 = scmp.ne.s32.totalorder %s45, %s61
      %p63 = scmp.eq.s32.totalorder %s23, 0
      %p64 = por %p62, %p63
      %s66 = sadd.s32 %s65, 1
      %p69 = scmp.eq.s32.totalorder %s17, 1
      %p70 = scmp.ne.s32.totalorder %s65, %s67
      %p71 = scmp.eq.s32.totalorder %s17, 0
      %p72 = por %p70, %p71
      %p73 = scmp.ne.s32.totalorder %s65, %s67
      %p74 = scmp.eq.s32.totalorder %s22, 1
      %p75 = por %p73, %p74
      %p76 = scmp.ne.s32.totalorder %s67, %s68
      %p77 = scmp.eq.s32.totalorder %s22, 0
      %p78 = por %p76, %p77
      %p79 = scmp.ne.s32.totalorder %s67, %s68
      %p80 = scmp.eq.s32.totalorder %s23, 1
      %p81 = por %p79, %p80
      %p83 = scmp.ne.s32.totalorder %s68, %s82
      %p84 = scmp.eq.s32.totalorder %s23, 0
      %p85 = por %p83, %p84
      %s86 = ssub.s32 %s24, %s36
      %p87 = scmp.eq.s32.totalorder %s86, 0
      %s89 = sadd.s32 %s88, 1
      %s90 = scalar_select %p87, %s88, %s89
      %p93 = pneg %p87
      %p94 = scmp.eq.s32.totalorder %s17, 1
      %p95 = por %p93, %p94
      %p96 = scmp.ne.s32.totalorder %s88, %s91
      %p97 = scmp.eq.s32.totalorder %s17, 0
      %p98 = por %p96, %p97
      %p99 = scmp.ne.s32.totalorder %s88, %s91
      %p100 = scmp.eq.s32.totalorder %s22, 1
      %p101 = por %p99, %p100
      %p102 = scmp.ne.s32.totalorder %s91, %s92
      %p103 = scmp.eq.s32.totalorder %s22, 0
      %p104 = por %p102, %p103
      %p105 = scmp.ne.s32.totalorder %s91, %s92
      %p106 = scmp.eq.s32.totalorder %s23, 1
      %p107 = por %p105, %p106
      %p109 = scmp.ne.s32.totalorder %s92, %s108
      %p110 = scmp.eq.s32.totalorder %s23, 0
      %p111 = por %p109, %p110
      %p112 = scmp.le.s32.totalorder 1, %s17
      %p113 = scmp.lt.s32.totalorder %s17, 3
      %p114 = pnand %p112, %p113
      %p115 = pneg %p114
      // Predicated region
      $region9: #{tpu_custom_call.1} parent=5 // pred_check
        _
      $region10: #{tpu_custom_call.1} parent=5 // pred_check_branch
        %117 = sbr.rel (%p114) target = $region12
      $region11: #{tpu_custom_call.1} parent=5 // pred_region
        %s118 = ssub.s32 %s17, 1
        // Predicated region
        $region13: #{tpu_custom_call.1} parent=11 // pred_check
          %p119 = pneg %p78
        $region14: #{tpu_custom_call.1} parent=11 // pred_check_branch
          %121 = sbr.rel (%p119) target = $region16
        $region15: #{tpu_custom_call.1} parent=11 // pred_region
          _
        $region16: #{tpu_custom_call.1} parent=11 // pred_fallthru
          _
      $region12: #{tpu_custom_call.1} parent=5 // pred_fallthru
        _
      %p122 = scmp.lt.s32.totalorder %s17, 2
      // Predicated region
      $region17: #{tpu_custom_call.1} parent=5 // pred_check
        %p123 = pneg %p122
      $region18: #{tpu_custom_call.1} parent=5 // pred_check_branch
        %125 = sbr.rel (%p123) target = $region20
      $region19: #{tpu_custom_call.1} parent=5 // pred_region
        // Predicated region
        $region21: #{tpu_custom_call.1} parent=19 // pred_check
          %p126 = pneg %p51
        $region22: #{tpu_custom_call.1} parent=19 // pred_check_branch
          %128 = sbr.rel (%p126) target = $region24
        $region23: #{tpu_custom_call.1} parent=19 // pred_region
          %s129 = sand.u32 %s41, 1
          %s130 = scalar_lea.sflag [#allocation8], %s129
          %s131 = sand.u32 %s41, 1
          %s132 = smul.addr %s131, 16
          %s133 = scalar_lea.vmem [#allocation7], %s132
          %s134 = smul.u32 2, %s24
          %136 = vsyncadd %s130, 0
          %s137 = smul.addr %s134, 2
          %s138 = sadd.s32 %s25, %s137
          %s139 = smul.addr %s138, 8
          %s140 = scalar_lea.hbm %s3, %s139
          %s141 = sshll.u32 %s140, 4
          %s142 = int_to_ptr.hbm [resolvable:$true] %s141
          %s143 = sshll.u32 %s133, 4
          %s144 = int_to_ptr.vmem [resolvable:$true] %s143
          %149 = dma.hbm_to_vmem [thread:$0]  %s142, 256, %s144, %s130, 256, 128, 8
        $region24: #{tpu_custom_call.1} parent=19 // pred_fallthru
          _
      $region20: #{tpu_custom_call.1} parent=5 // pred_fallthru
        _
      %p150 = scmp.le.s32.totalorder 1, %s17
      %p151 = scmp.lt.s32.totalorder %s17, 3
      %p152 = pnand %p150, %p151
      %p153 = pneg %p152
      // Predicated region
      $region25: #{tpu_custom_call.1} parent=5 // pred_check
        _
      $region26: #{tpu_custom_call.1} parent=5 // pred_check_branch
        %155 = sbr.rel (%p152) target = $region28
      $region27: #{tpu_custom_call.1} parent=5 // pred_region
        %s156 = ssub.s32 %s17, 1
        %s157 = sand.u32 %s44, 1
        %s158 = scalar_lea.sflag [#allocation8], %s157
        %s159 = sand.u32 %s44, 1
        %s160 = smul.addr %s159, 16
        %s161 = scalar_lea.vmem [#allocation7], %s160
        // Predicated region
        $region29: #{tpu_custom_call.1} parent=27 // pred_check
          %p162 = pneg %p57
        $region30: #{tpu_custom_call.1} parent=27 // pred_check_branch
          %164 = sbr.rel (%p162) target = $region32
        $region31: #{tpu_custom_call.1} parent=27 // pred_region
          %166 = dma.done %s158, 256
        $region32: #{tpu_custom_call.1} parent=27 // pred_fallthru
          _
        %s167 = sand.u32 %s44, 1
        %s168 = scalar_lea.sflag [#allocation8], %s167
        %s169 = sand.u32 %s44, 1
        %s170 = smul.addr %s169, 16
        %s171 = scalar_lea.vmem [#allocation7], %s170
        %p172 = pneg %p57
        %p173 = pneg %p54
        %p174 = pneg %p78
        %p175 = pneg %p75
        %p176 = pneg %p104
        %p177 = pneg %p101
        %p178 = scmp.lt.s32.totalorder %s26, 0
        %s179 = scalar_select %p178, %s26, 0
        %s180 = smul.addr %s179, 2
        %s181 = scalar_lea.vmem %s5, %s180
        %s182 = smul.u32 2, %s26
        %p183 = scmp.lt.s32.totalorder %s26, 0
        %s184 = scalar_select %p183, %s26, 0
        %s185 = smul.addr %s184, 2
        %s186 = scalar_lea.vmem %s5, %s185
        %p187 = scmp.eq.s32.totalorder %s27, 0
        // Predicated region
        $region33: #{tpu_custom_call.1} parent=27 // pred_check
          %p188 = pneg %p187
        $region34: #{tpu_custom_call.1} parent=27 // pred_check_branch
          %190 = sbr.rel (%p188) target = $region36
        $region35: #{tpu_custom_call.1} parent=27 // pred_region
          %vm191 = vcmask 1024
          %192 = vst.msk [vmem:[#allocation2] sm:$0x3] %vm191, 0.0
        $region36: #{tpu_custom_call.1} parent=27 // pred_fallthru
          _
        %v193 = vld [vmem:[%s161] sm:$0xff]
        %v194 = vld [vmem:[%s161 + $0x8] sm:$0xff]
        %vm195 = vcmask 261120
        %v196 = vsel %vm195, %v193, 0.0
        %197 = vadd.xlane.f32.xlu0 %v196
        %v198 = vpop.xlane.xlu0 %197
        %v199 = vsel %vm195, %v194, 0.0
        %200 = vadd.xlane.f32.xlu0 %v199
        %v201 = vpop.xlane.xlu0 %200
        %v202 = vrcp.pop 32.0
        %v203 = vmul.f32 32.0, %v202
        %v204 = vsub.f32 1.0, %v203
        %v205 = vmul.f32 %v202, %v204
        %v206 = vadd.f32 %v202, %v205
        %vm207 = vweird.f32 %v202
        %v208 = vsel %vm207, %v202, %v206
        %v209 = vmul.f32 %v198, %v208
        %v210 = vmul.f32 %v201, %v208
        %v211 = vsub.f32 %v193, %v209
        %v212 = vsub.f32 %v194, %v210
        %v213 = vmul.f32 %v211, %v211
        %v214 = vmul.f32 %v212, %v212
        %v215 = vsel %vm195, %v213, 0.0
        %216 = vadd.xlane.f32.xlu0 %v215
        %v217 = vpop.xlane.xlu0 %216
        %v218 = vsel %vm195, %v214, 0.0
        %219 = vadd.xlane.f32.xlu0 %v218
        %v220 = vpop.xlane.xlu0 %219
        %v221 = vmul.f32 %v217, 0.032258064
        %v222 = vmul.f32 %v220, 0.032258064
        %v223 = vrsqrt.pop %v221
        %v224 = vmul.f32 %v223, %v221
        %v225 = vmul.f32 %v224, %v223
        %v226 = vmul.f32 0.5, %v225
        %v227 = vsub.f32 1.5, %v226
        %v228 = vmul.f32 %v223, %v227
        %v229 = vmul.f32 %v221, %v228
        %vm230 = vcmp.eq.f32.partialorder %v221, inf
        %v231 = vsel %vm230, %v221, %v229
        %vm232 = vcmp.eq.f32.partialorder %v221, 0.0
        %v233 = vand.u32 %v221, 2147483648
        %v234 = vsel %vm232, %v233, %v231
        %v235 = vrsqrt.pop %v222
        %v236 = vmul.f32 %v235, %v222
        %v237 = vmul.f32 %v236, %v235
        %v238 = vmul.f32 0.5, %v237
        %v239 = vsub.f32 1.5, %v238
        %v240 = vmul.f32 %v235, %v239
        %v241 = vmul.f32 %v222, %v240
        %vm242 = vcmp.eq.f32.partialorder %v222, inf
        %v243 = vsel %vm242, %v222, %v241
        %vm244 = vcmp.eq.f32.partialorder %v222, 0.0
        %v245 = vand.u32 %v222, 2147483648
        %v246 = vsel %vm244, %v245, %v243
        %v247 = vadd.f32 %v234, 1e-06
        %v248 = vadd.f32 %v246, 1e-06
        %v249 = vrcp.pop %v247
        %v250 = vrcp.pop %v248
        %v251 = vld [vmem:[%s4] sm:$0x1]
        %v252 = vmul.f32 %v211, %v249
        %v253 = vmul.f32 %v212, %v250
        %v255 = vperm.slane %v251, 0
        %v257 = vmul.f32 %v252, %v255
        %v258 = vmul.f32 %v253, %v255
        %v259 = vsel %vm195, %v257, 0.0
        %260 = vadd.xlane.f32.xlu0 %v259
        %v261 = vpop.xlane.xlu0 %260
        %v262 = vsel %vm195, %v258, 0.0
        %263 = vadd.xlane.f32.xlu0 %v262
        %v264 = vpop.xlane.xlu0 %263
        %v265 = vld [vmem:[#allocation2] sm:$0x3]
        %v268 = vlaneseq
        %v269 = vand.u32 %v268, 127
        %v270 = vperm.slane %v261, %v269
        %v271 = vperm.slane %v264, %v269
        %vm272 = vcmask 1041409
        %v273 = vsel %vm272, %v271, %v270
        %vm275 = vcmask 58368
        %v276 = vsel %vm275, %v273, 0.0
        %277 = vadd.xlane.f32.xlu0 %v276
        %v278 = vpop.xlane.xlu0 %277
        %v279 = vadd.f32 %v265, %v278
        %vm280 = vcmask 1024
        %281 = vst.msk [vmem:[#allocation2] sm:$0x3] %vm280, %v279
        %p282 = scmp.eq.s32.totalorder %s27, 1
        // Predicated region
        $region37: #{tpu_custom_call.1} parent=27 // pred_check
          %p283 = pneg %p282
        $region38: #{tpu_custom_call.1} parent=27 // pred_check_branch
          %285 = sbr.rel (%p283) target = $region40
        $region39: #{tpu_custom_call.1} parent=27 // pred_region
          %v286 = vld [vmem:[%s4] sm:$0x1]
          %vm287 = vcmask 253952
          %v288 = vsel %vm287, %v286, 0.0
          %289 = vadd.xlane.f32.xlu0 %v288
          %v290 = vpop.xlane.xlu0 %289
          %v291 = vrot.slane %v290, 4
          %v292 = vadd.f32 %v290, %v291
          %v293 = vrot.slane %v292, 2
          %v294 = vadd.f32 %v292, %v293
          %v295 = vrot.slane %v294, 1
          %v296 = vadd.f32 %v294, %v295
          %s297 = vtos %v296
          %s298 = sld [smem:[#allocation4]]
          %s299 = smul.f32 %s298, 0.0625
          %v300 = vld [vmem:[#allocation2] sm:$0x3]
          %v301 = vstv %s299
          %v302 = vmul.f32 %v301, %v300
          %s303 = sld [smem:[#allocation5]]
          %s304 = smul.f32 %s303, %s297
          %v305 = vstv %s304
          %v306 = vadd.f32 %v302, %v305
          %s307 = sld [smem:[#allocation6]]
          %v308 = vstv %s307
          %v309 = vadd.f32 %v306, %v308
          %v310 = vxor.u32 %v309, 2147483648
          %v311 = vmul.f32 %v310, 1.442695
          %v312 = vpow.pop %v311
          %v313 = vadd.f32 %v312, 1.0
          %v314 = vrcp.pop %v313
          %v315 = vmul.f32 %v313, %v314
          %v316 = vsub.f32 1.0, %v315
          %v317 = vmul.f32 %v314, %v316
          %v318 = vadd.f32 %v314, %v317
          %vm319 = vweird.f32 %v313
          %vm320 = vweird.f32 %v314
          %vm321 = vmor %vm319, %vm320
          %v322 = vsel %vm321, %v314, %v318
          %v323 = vand.u32 2147483647, %v313
          %vm324 = vcmp.eq.f32.partialorder %v323, 8.507059e+37
          %v325 = vand.u32 %v313, 2147483648
          %v326 = vor.u32 1.1754944e-38, %v325
          %v327 = vsel %vm324, %v326, %v322
          %v328 = vmul.f32 1.0, %v327
          %329 = vst.msk [vmem:[%s186] sm:$0x3] %vm280, %v328
        $region40: #{tpu_custom_call.1} parent=27 // pred_fallthru
          _
        %p330 = scmp.lt.s32.totalorder %s26, 0
        %s331 = scalar_select %p330, %s26, 0
        %s332 = smul.addr %s331, 2
        %s333 = scalar_lea.vmem %s5, %s332
        // Predicated region
        $region41: #{tpu_custom_call.1} parent=27 // pred_check
          %p334 = pneg %p101
        $region42: #{tpu_custom_call.1} parent=27 // pred_check_branch
          %336 = sbr.rel (%p334) target = $region44
        $region43: #{tpu_custom_call.1} parent=27 // pred_region
          _
        $region44: #{tpu_custom_call.1} parent=27 // pred_fallthru
          _
        // Predicated region
        $region45: #{tpu_custom_call.1} parent=27 // pred_check
          %p337 = pneg %p101
        $region46: #{tpu_custom_call.1} parent=27 // pred_check_branch
          %339 = sbr.rel (%p337) target = $region48
        $region47: #{tpu_custom_call.1} parent=27 // pred_region
          %p340 = scmp.lt.s32.totalorder %s26, 0
          %s341 = scalar_select %p340, %s26, 0
          %s342 = smul.addr %s341, 2
          %s343 = scalar_lea.vmem %s5, %s342
        $region48: #{tpu_custom_call.1} parent=27 // pred_fallthru
          _
      $region28: #{tpu_custom_call.1} parent=5 // pred_fallthru
        _
      %p344 = scmp.le.s32.totalorder 2, %s17
      // Predicated region
      $region49: #{tpu_custom_call.1} parent=5 // pred_check
        %p345 = pneg %p344
      $region50: #{tpu_custom_call.1} parent=5 // pred_check_branch
        %347 = sbr.rel (%p345) target = $region52
      $region51: #{tpu_custom_call.1} parent=5 // pred_region
        %s348 = ssub.s32 %s17, 2
      $region52: #{tpu_custom_call.1} parent=5 // pred_fallthru
        _
    $region6: #{tpu_custom_call.1} parent=1 // loop_footer
      %s21 = sadd.s32 1, %s17
    $region7: #{tpu_custom_call.1} parent=1 // loop_footer_branch
      %16 = sbr.rel target = $region3
    $region8: #{tpu_custom_call.1} parent=1 // loop_exit
      _
    %349 = vsyncpa [#allocation8], 1
    %s350 = scalar_lea.sflag [#allocation8], 1
    %351 = vsyncpa %s350, 1

</llo_original>
